<compile_context>
chip_gen: v6e
topology: v6e:2x2x1
jax: 0.10.0
libtpu: 0.0.40
codegen_flags: <defaults>
</compile_context>

<pallas_src>
import math

import jax
import jax.numpy as jnp
from jax.experimental import pallas as pl
from jax.experimental.pallas import tpu as pltpu


LANE = 128
ACT_DTYPE = jnp.bfloat16        # activation / matmul-operand dtype (f32 accumulate)


def pad128(n):
    return ((n + LANE - 1) // LANE) * LANE


# ----------------------------------------------------------------------------
# In-kernel helpers
# ----------------------------------------------------------------------------

def _group_norm(x, gamma, beta, gmask, gmask_t, cnt, swish):
    """GroupNorm (+ optional Swish) on an (HW, Cpad) f32 tile.

    Group statistics are formed with a channel->group one-hot matmul so padded
    channels (zero rows of gmask) never contaminate them.  Centered two-pass
    variance avoids E[x^2]-E[x]^2 cancellation.
    """
    s1 = jnp.sum(x, axis=0, keepdims=True)                                   # (1, C)
    gmean = jnp.dot(s1, gmask, preferred_element_type=jnp.float32) / cnt     # (1, G)
    mean_c = jnp.dot(gmean, gmask_t, preferred_element_type=jnp.float32)     # (1, C)
    xc = x - mean_c
    s2 = jnp.sum(xc * xc, axis=0, keepdims=True)
    gvar = jnp.dot(s2, gmask, preferred_element_type=jnp.float32) / cnt
    inv = jax.lax.rsqrt(gvar + 1e-5)
    inv_c = jnp.dot(inv, gmask_t, preferred_element_type=jnp.float32)
    y = xc * inv_c * gamma + beta
    if swish:
        y = y * jax.nn.sigmoid(y)
    return y


# ----------------------------------------------------------------------------
# Fused [GroupNorm+Swish] + 3x3 conv (+time add) (+1x1-conv residual) kernel
# ----------------------------------------------------------------------------

def _make_block_conv_kernel(H, W, Cout_p, do_gn, has_time, has_res, cnt):
    HW = H * W

    def kernel(*refs):
        it = iter(refs)
        x_ref = next(it)
        if do_gn:
            g_ref = next(it)
            be_ref = next(it)
            m_ref = next(it)
            mt_ref = next(it)
        w_ref = next(it)
        bias_ref = next(it)
        if has_time:
            t_ref = next(it)
            tw_ref = next(it)
            tb_ref = next(it)
        if has_res:
            r_ref = next(it)
            rw_ref = next(it)
            rb_ref = next(it)
        o_ref = next(it)

        x = x_ref[0].astype(jnp.float32)                                 # (HW, Cin_p)
        if do_gn:
            y = _group_norm(x, g_ref[...], be_ref[...], m_ref[...], mt_ref[...],
                            cnt, swish=True)
        else:
            y = x

        # spatial coordinates of each flattened row, for the tap validity masks
        rows = jax.lax.broadcasted_iota(jnp.int32, (HW, 1), 0)
        ry = rows // W
        rx = rows - ry * W

        # 3x3 conv (padding=1): 9 shifted copies formed in VMEM via roll + mask,
        # accumulated with bf16 MXU matmuls into an f32 accumulator.
        acc = jnp.zeros((HW, Cout_p), jnp.float32)
        for ky in range(3):
            for kx in range(3):
                dy, dx = ky - 1, kx - 1
                d = dy * W + dx
                if d == 0:
                    tap = y
                else:
                    shifted = pltpu.roll(y, shift=(-d) % HW, axis=0)
                    valid = ((ry + dy >= 0) & (ry + dy < H) &
                             (rx + dx >= 0) & (rx + dx < W))
                    tap = jnp.where(valid, shifted, 0.0)
                acc = acc + jnp.dot(tap.astype(ACT_DTYPE), w_ref[ky * 3 + kx],
                                    preferred_element_type=jnp.float32)
        acc = acc + bias_ref[...]

        if has_time:
            # Swish(time_emb) @ W_mlp + b_mlp, broadcast over all pixels.
            tv = t_ref[0].astype(jnp.float32)                            # (1, Tp)
            tv = tv * jax.nn.sigmoid(tv)
            acc = acc + jnp.dot(tv.astype(ACT_DTYPE), tw_ref[...],
                                preferred_element_type=jnp.float32) + tb_ref[...]

        if has_res:
            # residual branch: res_in @ res_conv (identity matrix when Identity)
            acc = acc + jnp.dot(r_ref[0], rw_ref[...],
                                preferred_element_type=jnp.float32) + rb_ref[...]

        o_ref[0] = acc.astype(o_ref.dtype)

    return kernel


def block_conv(x_pad, bp, H, W, *, gn_swish, time=None, res=None,
               out_dtype=ACT_DTYPE):
    """x_pad: (B, H*W, Cin_p).  Returns (B, H*W, Cout_p)."""
    B, HW, Cin_p = x_pad.shape
    assert HW == H * W
    Cout_p = bp['w'].shape[-1]

    inputs = [x_pad]
    in_specs = [pl.BlockSpec((1, HW, Cin_p), lambda b: (b, 0, 0))]
    cnt = 1.0
    if gn_swish:
        groups = bp['gmask'].shape[-1]
        cnt = float(HW * bp['cg'])
        inputs += [bp['gn_g'], bp['gn_b'], bp['gmask'], bp['gmask_t']]
        in_specs += [
            pl.BlockSpec((1, Cin_p), lambda b: (0, 0)),
            pl.BlockSpec((1, Cin_p), lambda b: (0, 0)),
            pl.BlockSpec((Cin_p, groups), lambda b: (0, 0)),
            pl.BlockSpec((groups, Cin_p), lambda b: (0, 0)),
        ]
    inputs += [bp['w'], bp['b']]
    in_specs += [
        pl.BlockSpec((9, Cin_p, Cout_p), lambda b: (0, 0, 0)),
        pl.BlockSpec((1, Cout_p), lambda b: (0, 0)),
    ]
    if time is not None:
        t_pad, tw, tb = time
        Tp = t_pad.shape[-1]
        inputs += [t_pad, tw, tb]
        in_specs += [
            pl.BlockSpec((1, 1, Tp), lambda b: (b, 0, 0)),
            pl.BlockSpec((Tp, Cout_p), lambda b: (0, 0)),
            pl.BlockSpec((1, Cout_p), lambda b: (0, 0)),
        ]
    if res is not None:
        r_pad, rw, rb = res
        Cr_p = r_pad.shape[-1]
        inputs += [r_pad, rw, rb]
        in_specs += [
            pl.BlockSpec((1, HW, Cr_p), lambda b: (b, 0, 0)),
            pl.BlockSpec((Cr_p, Cout_p), lambda b: (0, 0)),
            pl.BlockSpec((1, Cout_p), lambda b: (0, 0)),
        ]

    kern = _make_block_conv_kernel(H, W, Cout_p, gn_swish,
                                   time is not None, res is not None, cnt)
    return pl.pallas_call(
        kern,
        out_shape=jax.ShapeDtypeStruct((B, HW, Cout_p), out_dtype),
        grid=(B,),
        in_specs=in_specs,
        out_specs=pl.BlockSpec((1, HW, Cout_p), lambda b: (b, 0, 0)),
        compiler_params=pltpu.CompilerParams(dimension_semantics=("parallel",)),
    )(*inputs)


# ----------------------------------------------------------------------------
# Fused GroupNorm + single-head self-attention + residual kernel
# ----------------------------------------------------------------------------

def _make_attn_kernel(HW, C_real, Cp, cnt):
    scale = 1.0 / math.sqrt(C_real)

    def kernel(x_ref, g_ref, b_ref, m_ref, mt_ref, wqkv_ref, wout_ref, bout_ref,
               o_ref):
        x = x_ref[0].astype(jnp.float32)                                  # (HW, Cp)
        y = _group_norm(x, g_ref[...], b_ref[...], m_ref[...], mt_ref[...],
                        cnt, swish=False)
        yb = y.astype(ACT_DTYPE)
        qkv = jnp.dot(yb, wqkv_ref[...], preferred_element_type=jnp.float32)
        q = qkv[:, :Cp].astype(ACT_DTYPE)
        k = qkv[:, Cp:2 * Cp].astype(ACT_DTYPE)
        v = qkv[:, 2 * Cp:3 * Cp].astype(ACT_DTYPE)
        s = jax.lax.dot_general(q, k, (((1,), (1,)), ((), ())),
                                preferred_element_type=jnp.float32) * scale
        s = s - jnp.max(s, axis=-1, keepdims=True)
        e = jnp.exp(s)
        p = e * pl.reciprocal(jnp.sum(e, axis=-1, keepdims=True), approx=True)
        out = jnp.dot(p.astype(ACT_DTYPE), v, preferred_element_type=jnp.float32)
        out = jnp.dot(out.astype(ACT_DTYPE), wout_ref[...],
                      preferred_element_type=jnp.float32) + bout_ref[...]
        o_ref[0] = (out + x).astype(o_ref.dtype)

    return kernel


def self_attention(x_pad, ap, H, W):
    B, HW, Cp = x_pad.shape
    groups = ap['gmask'].shape[-1]
    cnt = float(HW * ap['cg'])
    kern = _make_attn_kernel(HW, ap['c'], Cp, cnt)
    return pl.pallas_call(
        kern,
        out_shape=jax.ShapeDtypeStruct((B, HW, Cp), ACT_DTYPE),
        grid=(B,),
        in_specs=[
            pl.BlockSpec((1, HW, Cp), lambda b: (b, 0, 0)),
            pl.BlockSpec((1, Cp), lambda b: (0, 0)),
            pl.BlockSpec((1, Cp), lambda b: (0, 0)),
            pl.BlockSpec((Cp, groups), lambda b: (0, 0)),
            pl.BlockSpec((groups, Cp), lambda b: (0, 0)),
            pl.BlockSpec((Cp, 3 * Cp), lambda b: (0, 0)),
            pl.BlockSpec((Cp, Cp), lambda b: (0, 0)),
            pl.BlockSpec((1, Cp), lambda b: (0, 0)),
        ],
        out_specs=pl.BlockSpec((1, HW, Cp), lambda b: (b, 0, 0)),
        compiler_params=pltpu.CompilerParams(dimension_semantics=("parallel",)),
    )(x_pad, ap['gn_g'], ap['gn_b'], ap['gmask'], ap['gmask_t'],
      ap['wqkv'], ap['wout'], ap['bout'])


# ----------------------------------------------------------------------------
# Stride-2 3x3 conv (Downsample): 9 accumulating tap matmuls
# ----------------------------------------------------------------------------

def _make_tapconv_kernel(HWo, Cout_p):
    def kernel(t_ref, w_ref, b_ref, o_ref):
        acc = jnp.zeros((HWo, Cout_p), jnp.float32)
        for t in range(9):
            acc = acc + jnp.dot(t_ref[t, 0], w_ref[t],
                                preferred_element_type=jnp.float32)
        o_ref[0] = (acc + b_ref[...]).astype(o_ref.dtype)
    return kernel


def downsample_conv(x_pad, p, H, W):
    """3x3 / stride 2 / pad 1 conv.  The 9 strided taps are gathered with XLA
    strided slices in the wrapper (~2.25x the input, non-overlapping), then
    reduced with accumulating bf16 MXU matmuls in one kernel per batch."""
    B, HW, Cp = x_pad.shape
    Cout_p = p['w'].shape[-1]
    Ho = (H - 1) // 2 + 1
    Wo = (W - 1) // 2 + 1
    x4 = x_pad.reshape(B, H, W, Cp)
    xp = jnp.pad(x4, ((0, 0), (1, 1), (1, 1), (0, 0)))
    taps = []
    for ky in range(3):
        for kx in range(3):
            taps.append(
                xp[:, ky:ky + 2 * (Ho - 1) + 1:2, kx:kx + 2 * (Wo - 1) + 1:2, :]
                .reshape(B, Ho * Wo, Cp))
    taps = jnp.stack(taps, axis=0)                            # (9, B, HoWo, Cp)
    out = pl.pallas_call(
        _make_tapconv_kernel(Ho * Wo, Cout_p),
        out_shape=jax.ShapeDtypeStruct((B, Ho * Wo, Cout_p), ACT_DTYPE),
        grid=(B,),
        in_specs=[
            pl.BlockSpec((9, 1, Ho * Wo, Cp), lambda b: (0, b, 0, 0)),
            pl.BlockSpec((9, Cp, Cout_p), lambda b: (0, 0, 0)),
            pl.BlockSpec((1, Cout_p), lambda b: (0, 0)),
        ],
        out_specs=pl.BlockSpec((1, Ho * Wo, Cout_p), lambda b: (b, 0, 0)),
        compiler_params=pltpu.CompilerParams(dimension_semantics=("parallel",)),
    )(taps, p['w'], p['b'])
    return out, Ho, Wo


# ----------------------------------------------------------------------------
# Time-embedding MLP (Linear -> Swish -> Linear) fused in one kernel
# ----------------------------------------------------------------------------

def _time_mlp_kernel(e_ref, w1_ref, b1_ref, w2_ref, b2_ref, o_ref):
    h = jnp.dot(e_ref[...], w1_ref[...],
                preferred_element_type=jnp.float32) + b1_ref[...]
    h = h * jax.nn.sigmoid(h)
    o_ref[...] = (jnp.dot(h, w2_ref[...], preferred_element_type=jnp.float32)
                  + b2_ref[...]).astype(o_ref.dtype)


def time_embedding(time, dim):
    inv_freq = jnp.exp(jnp.arange(0, dim, 2, dtype=jnp.float32)
                       * (-math.log(10000.0) / dim))
    sinusoid = time.reshape(-1, 1).astype(jnp.float32) * inv_freq.reshape(1, -1)
    return jnp.concatenate([jnp.sin(sinusoid), jnp.cos(sinusoid)], axis=-1)


def time_mlp(p, time, inner):
    emb = time_embedding(time, inner)                         # (B, inner)
    B = emb.shape[0]
    inp = pad128(inner)
    emb = jnp.pad(emb, ((0, 0), (0, inp - inner)))
    Tp = p['w2'].shape[-1]
    out = pl.pallas_call(
        _time_mlp_kernel,
        out_shape=jax.ShapeDtypeStruct((B, Tp), jnp.float32),
    )(emb, p['w1'], p['b1'], p['w2'], p['b2'])
    return out.reshape(B, 1, Tp)


# ----------------------------------------------------------------------------
# Parameter init (deterministic, synthetic) -- produced directly in the padded,
# lane-dense layout the kernels consume.
# ----------------------------------------------------------------------------

class KeyGen:
    def __init__(self, key):
        self.key = key

    def __call__(self):
        self.key, sub = jax.random.split(self.key)
        return sub


def _init_conv3x3(kg, cin, cout):
    cin_p, cout_p = pad128(cin), pad128(cout)
    s = 1.0 / math.sqrt(9 * cin)
    w = jax.random.normal(kg(), (9, cin, cout), jnp.float32) * s
    b = jax.random.normal(kg(), (cout,), jnp.float32) * s
    wp = jnp.zeros((9, cin_p, cout_p), jnp.float32).at[:, :cin, :cout].set(w)
    bp = jnp.zeros((1, cout_p), jnp.float32).at[0, :cout].set(b)
    return {'w': wp.astype(ACT_DTYPE), 'b': bp}


def _init_linear_padded(kg, din, dout):
    din_p, dout_p = pad128(din), pad128(dout)
    s = 1.0 / math.sqrt(din)
    w = jax.random.normal(kg(), (din, dout), jnp.float32) * s
    b = jax.random.normal(kg(), (dout,), jnp.float32) * s
    wp = jnp.zeros((din_p, dout_p), jnp.float32).at[:din, :dout].set(w)
    bp = jnp.zeros((1, dout_p), jnp.float32).at[0, :dout].set(b)
    return wp, bp


def _init_gn(cin, groups):
    cin_p = pad128(cin)
    cg = cin // groups
    g = jnp.zeros((1, cin_p), jnp.float32).at[0, :cin].set(1.0)
    b = jnp.zeros((1, cin_p), jnp.float32)
    ch = jnp.arange(cin)
    gm = jnp.zeros((cin_p, groups), jnp.float32).at[ch, ch // cg].set(1.0)
    return {'gn_g': g, 'gn_b': b, 'gmask': gm, 'gmask_t': gm.T, 'cg': cg}


def _init_block(kg, cin, cout, groups):
    p = _init_conv3x3(kg, cin, cout)
    p.update(_init_gn(cin, groups))
    return p


def _init_resnet(kg, cin, cout, time_dim, groups):
    p = {'b1': _init_block(kg, cin, cout, groups),
         'b2': _init_block(kg, cout, cout, groups)}
    if time_dim is not None:
        tw, tb = _init_linear_padded(kg, time_dim, cout)
        p['mlp_w'], p['mlp_b'] = tw.astype(ACT_DTYPE), tb
    else:
        p['mlp_w'], p['mlp_b'] = None, None
    cin_p, cout_p = pad128(cin), pad128(cout)
    if cin != cout:
        rw, rb = _init_linear_padded(kg, cin, cout)
    else:
        rw = jnp.zeros((cin_p, cout_p), jnp.float32)
        rw = rw.at[jnp.arange(cin), jnp.arange(cin)].set(1.0)   # Identity residual
        rb = jnp.zeros((1, cout_p), jnp.float32)
    p['res_w'], p['res_b'] = rw.astype(ACT_DTYPE), rb
    return p


def _init_attn(kg, c, groups):
    cp = pad128(c)
    s = 1.0 / math.sqrt(c)
    wq = jax.random.normal(kg(), (c, c), jnp.float32) * s
    wk = jax.random.normal(kg(), (c, c), jnp.float32) * s
    wv = jax.random.normal(kg(), (c, c), jnp.float32) * s
    wo = jax.random.normal(kg(), (c, c), jnp.float32) * s
    bo = jax.random.normal(kg(), (c,), jnp.float32) * s
    wqkv = jnp.zeros((cp, 3 * cp), jnp.float32)
    wqkv = wqkv.at[:c, 0:c].set(wq)
    wqkv = wqkv.at[:c, cp:cp + c].set(wk)
    wqkv = wqkv.at[:c, 2 * cp:2 * cp + c].set(wv)
    wout = jnp.zeros((cp, cp), jnp.float32).at[:c, :c].set(wo)
    bout = jnp.zeros((1, cp), jnp.float32).at[0, :c].set(bo)
    p = {'wqkv': wqkv.astype(ACT_DTYPE), 'wout': wout.astype(ACT_DTYPE),
         'bout': bout, 'c': c}
    p.update(_init_gn(c, groups))
    return p


def _init_resattn(kg, cin, cout, time_dim, groups, with_attn):
    return {'type': 'resattn', 'cin': cin, 'cout': cout,
            'res': _init_resnet(kg, cin, cout, time_dim, groups),
            'attn': _init_attn(kg, cout, groups) if with_attn else None}


def init_unet(key, cfg):
    kg = KeyGen(key)
    inner = cfg['inner_channel']
    groups = cfg['norm_groups']
    mults = cfg['channel_mults']
    res_blocks = cfg['res_blocks']
    attn_res = cfg['attn_res']
    in_ch = cfg['in_channel']
    out_ch = cfg['out_channel']

    if cfg['with_time_emb']:
        time_dim = inner
        w1, b1 = _init_linear_padded(kg, inner, inner * 4)
        w2, b2 = _init_linear_padded(kg, inner * 4, inner)
        time_mlp_p = {'w1': w1, 'b1': b1, 'w2': w2, 'b2': b2}
    else:
        time_dim, time_mlp_p = None, None

    num_mults = len(mults)
    pre = inner
    feat_channels = [pre]
    now_res = cfg['image_size']

    downs = [{'type': 'head', 'cin': in_ch, 'cout': inner,
              **_init_conv3x3(kg, in_ch, inner)}]
    for ind in range(num_mults):
        is_last = ind == num_mults - 1
        use_attn = now_res in attn_res
        cm = inner * mults[ind]
        for _ in range(res_blocks):
            downs.append(_init_resattn(kg, pre, cm, time_dim, groups, use_attn))
            feat_channels.append(cm)
            pre = cm
        if not is_last:
            downs.append({'type': 'down', 'cin': pre, 'cout': pre,
                          **_init_conv3x3(kg, pre, pre)})
            feat_channels.append(pre)
            now_res //= 2

    mid = [_init_resattn(kg, pre, pre, time_dim, groups, True),
           _init_resattn(kg, pre, pre, time_dim, groups, False)]

    ups = []
    for ind in reversed(range(num_mults)):
        is_last = ind < 1
        use_attn = now_res in attn_res
        cm = inner * mults[ind]
        for _ in range(res_blocks + 1):
            ups.append(_init_resattn(kg, pre + feat_channels.pop(), cm,
                                     time_dim, groups, use_attn))
            pre = cm
        if not is_last:
            ups.append({'type': 'up', 'cin': pre, 'cout': pre,
                        **_init_conv3x3(kg, pre, pre)})
            now_res *= 2

    final = {'cout': out_ch, **_init_block(kg, pre, out_ch, groups)}
    return {'time_mlp': time_mlp_p, 'downs': downs, 'mid': mid, 'ups': ups,
            'final': final}


# ----------------------------------------------------------------------------
# UNet forward
# ----------------------------------------------------------------------------

def resnet_block_fwd(rp, x_pad, t_pad, H, W):
    tm = None
    if t_pad is not None and rp['mlp_w'] is not None:
        tm = (t_pad, rp['mlp_w'], rp['mlp_b'])
    h = block_conv(x_pad, rp['b1'], H, W, gn_swish=True, time=tm)
    return block_conv(h, rp['b2'], H, W, gn_swish=True,
                      res=(x_pad, rp['res_w'], rp['res_b']))


def resattn_fwd(layer, x_pad, t_pad, H, W):
    x_pad = resnet_block_fwd(layer['res'], x_pad, t_pad, H, W)
    if layer['attn'] is not None:
        x_pad = self_attention(x_pad, layer['attn'], H, W)
    return x_pad


def concat_skip(x_pad, xc, f_pad, fc):
    cat = jnp.concatenate([x_pad[..., :xc], f_pad[..., :fc]], axis=-1)
    cp = pad128(xc + fc)
    if cat.shape[-1] < cp:
        cat = jnp.pad(cat, ((0, 0), (0, 0), (0, cp - cat.shape[-1])))
    return cat


def unet_forward(params, x_nchw, time, cfg):
    inner = cfg['inner_channel']
    B, Cin, H, W = x_nchw.shape

    # NCHW -> flattened channels-last, channels zero-padded to a lane multiple.
    x = jnp.transpose(x_nchw, (0, 2, 3, 1)).reshape(B, H * W, Cin)
    x = jnp.pad(x, ((0, 0), (0, 0), (0, pad128(Cin) - Cin))).astype(ACT_DTYPE)

    t_pad = (time_mlp(params['time_mlp'], time, inner)
             if params['time_mlp'] is not None else None)

    feats = []                                   # (activation, real channel count)
    cur_c = Cin
    for layer in params['downs']:
        if layer['type'] == 'resattn':
            x = resattn_fwd(layer, x, t_pad, H, W)
        elif layer['type'] == 'head':
            x = block_conv(x, layer, H, W, gn_swish=False)
        else:                                    # 'down': stride-2 conv
            x, H, W = downsample_conv(x, layer, H, W)
        cur_c = layer['cout']
        feats.append((x, cur_c))

    for layer in params['mid']:
        x = resattn_fwd(layer, x, t_pad, H, W)
        cur_c = layer['cout']

    for layer in params['ups']:
        if layer['type'] == 'resattn':
            f, fc = feats.pop()
            x = resattn_fwd(layer, concat_skip(x, cur_c, f, fc), t_pad, H, W)
            cur_c = layer['cout']
        else:                                    # 'up': nearest 2x + fused 3x3 conv
            # TODO(synk): fold the nearest-upsample into the conv kernel
            # (parity-decomposed taps) to avoid materializing the 4x feature map.
            Cp = x.shape[-1]
            x4 = x.reshape(B, H, W, Cp)
            x4 = jnp.repeat(jnp.repeat(x4, 2, axis=1), 2, axis=2)
            H, W = 2 * H, 2 * W
            x = block_conv(x4.reshape(B, H * W, Cp), layer, H, W, gn_swish=False)
            cur_c = layer['cout']

    x = block_conv(x, params['final'], H, W, gn_swish=True, out_dtype=jnp.float32)
    out_ch = params['final']['cout']
    out = x[..., :out_ch].reshape(B, H, W, out_ch)
    return jnp.transpose(out, (0, 3, 1, 2))      # NHWC -> NCHW


# ----------------------------------------------------------------------------
# main
# ----------------------------------------------------------------------------

if __name__ == "__main__":
    # Small-but-representative UNet config (two levels, attention at res 8,
    # one res block per level, with time embedding).
    cfg = dict(in_channel=4, out_channel=2, inner_channel=32, norm_groups=32,
               channel_mults=(1, 2), attn_res=(8,), res_blocks=1,
               with_time_emb=True, image_size=16)

    key = jax.random.PRNGKey(0)
    pkey, xkey, tkey = jax.random.split(key, 3)

    params = init_unet(pkey, cfg)
    x = jax.random.normal(xkey, (2, cfg['in_channel'],
                                 cfg['image_size'], cfg['image_size']), jnp.float32)
    time = jax.random.uniform(tkey, (2,), jnp.float32) * 1000.0

    out = unet_forward(params, x, time, cfg)
    out = jax.block_until_ready(out)

    assert out.shape == (2, cfg['out_channel'], cfg['image_size'], cfg['image_size'])
    assert bool(jnp.all(jnp.isfinite(out)))
    print("KERNEL_OK")
</pallas_src>

<mosaic_0001>
module attributes {stable_mosaic.version = 11 : i64} {
  func.func @_time_mlp_kernel(%arg0: memref<2x128xf32, #tpu.memory_space<vmem>>, %arg1: memref<128x128xf32, #tpu.memory_space<vmem>>, %arg2: memref<1x128xf32, #tpu.memory_space<vmem>>, %arg3: memref<128x128xf32, #tpu.memory_space<vmem>>, %arg4: memref<1x128xf32, #tpu.memory_space<vmem>>, %arg5: memref<2x128xf32, #tpu.memory_space<vmem>>) attributes {dimension_semantics = [], scalar_prefetch = 0 : i64, scratch_operands = 0 : i64, tpu.core_type = #tpu.core_type<tc>} {
    %c0 = arith.constant 0 : index
    %c0_0 = arith.constant 0 : index
    %0 = vector.load %arg0[%c0, %c0_0] : memref<2x128xf32, #tpu.memory_space<vmem>>, vector<2x128xf32>
    %c0_1 = arith.constant 0 : index
    %c0_2 = arith.constant 0 : index
    %1 = vector.load %arg1[%c0_1, %c0_2] : memref<128x128xf32, #tpu.memory_space<vmem>>, vector<128x128xf32>
    %cst = arith.constant dense<0.000000e+00> : vector<2x128xf32>
    %2 = tpu.matmul %0, %1, %cst {dimension_numbers = #tpu.dot_dimension_numbers<[1], [0], [0], [1], [0, 0, 1, 1], [], []>} : vector<2x128xf32>, vector<128x128xf32>, vector<2x128xf32> -> vector<2x128xf32>
    %c0_3 = arith.constant 0 : index
    %c0_4 = arith.constant 0 : index
    %3 = vector.load %arg2[%c0_3, %c0_4] : memref<1x128xf32, #tpu.memory_space<vmem>>, vector<1x128xf32>
    %4 = vector.broadcast %3 : vector<1x128xf32> to vector<2x128xf32>
    %5 = arith.addf %2, %4 : vector<2x128xf32>
    %6 = arith.negf %5 : vector<2x128xf32>
    %7 = math.exp %6 : vector<2x128xf32>
    %cst_5 = arith.constant 1.000000e+00 : f32
    %8 = vector.broadcast %cst_5 : f32 to vector<2x128xf32>
    %9 = arith.addf %8, %7 : vector<2x128xf32>
    %10 = arith.divf %8, %9 : vector<2x128xf32>
    %11 = arith.mulf %5, %10 : vector<2x128xf32>
    %c0_6 = arith.constant 0 : index
    %c0_7 = arith.constant 0 : index
    %12 = vector.load %arg3[%c0_6, %c0_7] : memref<128x128xf32, #tpu.memory_space<vmem>>, vector<128x128xf32>
    %cst_8 = arith.constant dense<0.000000e+00> : vector<2x128xf32>
    %13 = tpu.matmul %11, %12, %cst_8 {dimension_numbers = #tpu.dot_dimension_numbers<[1], [0], [0], [1], [0, 0, 1, 1], [], []>} : vector<2x128xf32>, vector<128x128xf32>, vector<2x128xf32> -> vector<2x128xf32>
    %c0_9 = arith.constant 0 : index
    %c0_10 = arith.constant 0 : index
    %14 = vector.load %arg4[%c0_9, %c0_10] : memref<1x128xf32, #tpu.memory_space<vmem>>, vector<1x128xf32>
    %15 = vector.broadcast %14 : vector<1x128xf32> to vector<2x128xf32>
    %16 = arith.addf %13, %15 : vector<2x128xf32>
    %c0_11 = arith.constant 0 : index
    %c0_12 = arith.constant 0 : index
    %17 = vector.load %arg5[%c0_11, %c0_12] : memref<2x128xf32, #tpu.memory_space<vmem>>, vector<2x128xf32>
    tpu.vector_store %arg5[%c0_11, %c0_12], %16 {strides = array<i32>} : memref<2x128xf32, #tpu.memory_space<vmem>>, vector<2x128xf32>,
    return
  }
}

</mosaic_0001>

<llo_original>
// kernel: tpu_custom_call.1
$region0: #{tpu_custom_call.1}
  #allocation0 [shape = 'u32[]', space=smem, size = 0x4, offset = 0x4, fixed_abs, tag = 'smem constant byte address 0x4 - core index']
  #allocation1 [shape = 'u32[144,128]{1,0:T(1,128)}', space=vmem, size = 0x12000, scoped, tag = 'internal scratch']
  %s0 = inlined_call_operand.hbm [shape: f32[2,128], index: 0, kind: input, shape index: {}]
  %s1 = inlined_call_operand.hbm [shape: f32[128,128], index: 1, kind: input, shape index: {}]
  %s2 = inlined_call_operand.vmem [shape: f32[1,128], index: 2, kind: input, shape index: {}]
  %s3 = inlined_call_operand.hbm [shape: f32[128,128], index: 3, kind: input, shape index: {}]
  %s4 = inlined_call_operand.vmem [shape: f32[1,128], index: 4, kind: input, shape index: {}]
  %s5 = inlined_call_operand.hbm [shape: f32[2,128], index: 5, kind: output, shape index: {}]
  %s6 = sld [smem:[#allocation0]]
  $region42: #{tpu_custom_call.1} parent=0
    _
  %s8 = ssub.s32 1, %s6
  %s9 = scalar_select 0, %s8, %s6
  $region1: #{tpu_custom_call.1} parent=0
    #allocation2 [shape = 'u8[1024]{0}', space=vmem, size = 0x400, scoped, tag = 'input window, operand 0, single buffered']
    #allocation3 [shape = 's32[1]{0}', space=sflag, size = 0x4, scoped, tag = 'scoped memory for tpu_custom_call.1']
    #allocation4 [shape = 's32[1]{0}', space=sflag, size = 0x4, scoped, tag = 'scoped memory for tpu_custom_call.1']
    #allocation5 [shape = 'u8[65536]{0}', space=vmem, size = 0x10000, scoped, tag = 'input window, operand 1, single buffered']
    #allocation6 [shape = 's32[1]{0}', space=sflag, size = 0x4, scoped, tag = 'scoped memory for tpu_custom_call.1']
    #allocation7 [shape = 'u8[65536]{0}', space=vmem, size = 0x10000, scoped, tag = 'input window, operand 3, single buffered']
    #allocation8 [shape = 'u8[1024]{0}', space=vmem, size = 0x400, scoped, tag = 'output window, operand 0, single buffered']
    %10 = vsyncpa [#allocation3], 0
    %11 = vsyncpa [#allocation6], 0
    %12 = vsyncpa [#allocation4], 0
    // Predicated region
    $region2: #{tpu_custom_call.1} parent=1 // pred_check
      _
    $region3: #{tpu_custom_call.1} parent=1 // pred_check_branch
      %14 = sbr.rel (0) target = $region5
    $region4: #{tpu_custom_call.1} parent=1 // pred_region
      %s16 = ssub.s32 32, 32
      %17 = vsyncadd [#allocation3], %s16
      %s19 = sshll.u32 [#allocation2], 4
      %s20 = int_to_ptr.vmem [resolvable:$true] %s19
      %22 = dma.hbm_to_vmem [thread:$0]  %s0, 32, %s20, [#allocation3]
    $region5: #{tpu_custom_call.1} parent=1 // pred_fallthru
      _
    // Predicated region
    $region6: #{tpu_custom_call.1} parent=1 // pred_check
      _
    $region7: #{tpu_custom_call.1} parent=1 // pred_check_branch
      %24 = sbr.rel (0) target = $region9
    $region8: #{tpu_custom_call.1} parent=1 // pred_region
      %s26 = ssub.s32 2048, 2048
      %27 = vsyncadd [#allocation6], %s26
      %s28 = sshll.u32 [#allocation5], 4
      %s29 = int_to_ptr.vmem [resolvable:$true] %s28
      %34 = dma.hbm_to_vmem [thread:$0]  %s1, 2048, %s29, [#allocation6], 128, 128, 8
    $region9: #{tpu_custom_call.1} parent=1 // pred_fallthru
      _
    // Predicated region
    $region10: #{tpu_custom_call.1} parent=1 // pred_check
      _
    $region11: #{tpu_custom_call.1} parent=1 // pred_check_branch
      %36 = sbr.rel (0) target = $region13
    $region12: #{tpu_custom_call.1} parent=1 // pred_region
      _
    $region13: #{tpu_custom_call.1} parent=1 // pred_fallthru
      _
    // Predicated region
    $region14: #{tpu_custom_call.1} parent=1 // pred_check
      _
    $region15: #{tpu_custom_call.1} parent=1 // pred_check_branch
      %38 = sbr.rel (0) target = $region17
    $region16: #{tpu_custom_call.1} parent=1 // pred_region
      %s40 = ssub.s32 2048, 2048
      %41 = vsyncadd [#allocation6], %s40
      %s42 = sshll.u32 [#allocation7], 4
      %s43 = int_to_ptr.vmem [resolvable:$true] %s42
      %48 = dma.hbm_to_vmem [thread:$0]  %s3, 2048, %s43, [#allocation6], 128, 128, 8
    $region17: #{tpu_custom_call.1} parent=1 // pred_fallthru
      _
    // Predicated region
    $region18: #{tpu_custom_call.1} parent=1 // pred_check
      _
    $region19: #{tpu_custom_call.1} parent=1 // pred_check_branch
      %50 = sbr.rel (0) target = $region21
    $region20: #{tpu_custom_call.1} parent=1 // pred_region
      _
    $region21: #{tpu_custom_call.1} parent=1 // pred_fallthru
      _
    // Predicated region
    $region22: #{tpu_custom_call.1} parent=1 // pred_check
      _
    $region23: #{tpu_custom_call.1} parent=1 // pred_check_branch
      %52 = sbr.rel (0) target = $region25
    $region24: #{tpu_custom_call.1} parent=1 // pred_region
      %53 = dma.done [#allocation3], 32
    $region25: #{tpu_custom_call.1} parent=1 // pred_fallthru
      _
    // Predicated region
    $region26: #{tpu_custom_call.1} parent=1 // pred_check
      _
    $region27: #{tpu_custom_call.1} parent=1 // pred_check_branch
      %55 = sbr.rel (0) target = $region29
    $region28: #{tpu_custom_call.1} parent=1 // pred_region
      %56 = dma.done [#allocation6], 2048
    $region29: #{tpu_custom_call.1} parent=1 // pred_fallthru
      _
    // Predicated region
    $region30: #{tpu_custom_call.1} parent=1 // pred_check
      _
    $region31: #{tpu_custom_call.1} parent=1 // pred_check_branch
      %58 = sbr.rel (0) target = $region33
    $region32: #{tpu_custom_call.1} parent=1 // pred_region
      %59 = dma.done [#allocation6], 2048
    $region33: #{tpu_custom_call.1} parent=1 // pred_fallthru
      _
    %v60 = vld [vmem:[#allocation2] sm:$0x3]
    %v61 = vld [vmem:[#allocation5] sm:$0xff]
    %v62 = vld [vmem:[#allocation5 + $0x8] sm:$0xff]
    %v63 = vld [vmem:[#allocation5 + $0x10] sm:$0xff]
    %v64 = vld [vmem:[#allocation5 + $0x18] sm:$0xff]
    %v65 = vld [vmem:[#allocation5 + $0x20] sm:$0xff]
    %v66 = vld [vmem:[#allocation5 + $0x28] sm:$0xff]
    %v67 = vld [vmem:[#allocation5 + $0x30] sm:$0xff]
    %v68 = vld [vmem:[#allocation5 + $0x38] sm:$0xff]
    %v69 = vld [vmem:[#allocation5 + $0x40] sm:$0xff]
    %v70 = vld [vmem:[#allocation5 + $0x48] sm:$0xff]
    %v71 = vld [vmem:[#allocation5 + $0x50] sm:$0xff]
    %v72 = vld [vmem:[#allocation5 + $0x58] sm:$0xff]
    %v73 = vld [vmem:[#allocation5 + $0x60] sm:$0xff]
    %v74 = vld [vmem:[#allocation5 + $0x68] sm:$0xff]
    %v75 = vld [vmem:[#allocation5 + $0x70] sm:$0xff]
    %v76 = vld [vmem:[#allocation5 + $0x78] sm:$0xff]
    %v77 = vld [vmem:[%s2] sm:$0x1]
    %v79 = vlaneseq
    %v80 = vshrl.u32 %v79, 7
    %v81 = vsub.s32 0, %v80
    %v82 = vrot.slane %v77, %v81
    %84 = vmatprep.subr.mxu0 0.0
    %85 = vmatpush1.msra.mxu0 %v76
    %86 = vmatprep.subr.mxu0 0.0
    %87 = vmatpush1.msra.mxu0 %v75
    %88 = vmatprep.subr.mxu0 0.0
    %89 = vmatpush1.msra.mxu0 %v74
    %90 = vmatprep.subr.mxu0 0.0
    %91 = vmatpush1.msra.mxu0 %v73
    %92 = vmatprep.subr.mxu0 0.0
    %93 = vmatpush1.msra.mxu0 %v72
    %94 = vmatprep.subr.mxu0 0.0
    %95 = vmatpush1.msra.mxu0 %v71
    %96 = vmatprep.subr.mxu0 0.0
    %97 = vmatpush1.msra.mxu0 %v70
    %98 = vmatprep.subr.mxu0 0.0
    %99 = vmatpush1.msra.mxu0 %v69
    %100 = vmatprep.subr.mxu0 0.0
    %101 = vmatpush1.msra.mxu0 %v68
    %102 = vmatprep.subr.mxu0 0.0
    %103 = vmatpush1.msra.mxu0 %v67
    %104 = vmatprep.subr.mxu0 0.0
    %105 = vmatpush1.msra.mxu0 %v66
    %106 = vmatprep.subr.mxu0 0.0
    %107 = vmatpush1.msra.mxu0 %v65
    %108 = vmatprep.subr.mxu0 0.0
    %109 = vmatpush1.msra.mxu0 %v64
    %110 = vmatprep.subr.mxu0 0.0
    %111 = vmatpush1.msra.mxu0 %v63
    %112 = vmatprep.subr.mxu0 0.0
    %113 = vmatpush1.msra.mxu0 %v62
    %114 = vmatprep.subr.mxu0 0.0
    %115 = vmatpush1.msra.mxu0 %v61
    %116 = vmatprep.subr.mxu0 0.0
    %117 = vmatpush2.msra.mxu0 0.0
    %118 = vmatprep.subr.mxu0 0.0
    %119 = vmatpush2.msra.mxu0 0.0
    %120 = vmatprep.subr.mxu0 0.0
    %121 = vmatpush2.msra.mxu0 0.0
    %122 = vmatprep.subr.mxu0 0.0
    %123 = vmatpush2.msra.mxu0 0.0
    %124 = vmatprep.subr.mxu0 0.0
    %125 = vmatpush2.msra.mxu0 0.0
    %126 = vmatprep.subr.mxu0 0.0
    %127 = vmatpush2.msra.mxu0 0.0
    %128 = vmatprep.subr.mxu0 0.0
    %129 = vmatpush2.msra.mxu0 0.0
    %130 = vmatprep.subr.mxu0 0.0
    %131 = vmatpush2.msra.mxu0 0.0
    %132 = vmatprep.subr.mxu0 0.0
    %133 = vmatpush2.msra.mxu0 0.0
    %134 = vmatprep.subr.mxu0 0.0
    %135 = vmatpush2.msra.mxu0 0.0
    %136 = vmatprep.subr.mxu0 0.0
    %137 = vmatpush2.msra.mxu0 0.0
    %138 = vmatprep.subr.mxu0 0.0
    %139 = vmatpush2.msra.mxu0 0.0
    %140 = vmatprep.subr.mxu0 0.0
    %141 = vmatpush2.msra.mxu0 0.0
    %142 = vmatprep.subr.mxu0 0.0
    %143 = vmatpush2.msra.mxu0 0.0
    %144 = vmatprep.subr.mxu0 0.0
    %145 = vmatpush2.msra.mxu0 0.0
    %146 = vmatprep.subr.mxu0 0.0
    %147 = vmatpush2.msra.mxu0 0.0
    %148 = vmatprep.mubr.f32.mxu0 0.0
    %149 = vmatmul.mubr.f32.gmra.mxu0 %v60
    %v150 = vpop.f32.mrf.mxu0
    %v151 = vadd.f32 %v82, %v150
    %v152 = vpop.f32.mrf.mxu0
    %153 = vdwg.mxu0
    %v154 = vxor.u32 %v151, 2147483648
    %v155 = vmul.f32 %v154, 1.442695
    %v156 = vpow.pop %v155
    %v157 = vadd.f32 %v156, 1.0
    %v158 = vrcp.pop %v157
    %v159 = vmul.f32 1.0, %v158
    %v160 = vmul.f32 %v151, %v159
    %v161 = vld [vmem:[#allocation7] sm:$0xff]
    %v162 = vld [vmem:[#allocation7 + $0x8] sm:$0xff]
    %v163 = vld [vmem:[#allocation7 + $0x10] sm:$0xff]
    %v164 = vld [vmem:[#allocation7 + $0x18] sm:$0xff]
    %v165 = vld [vmem:[#allocation7 + $0x20] sm:$0xff]
    %v166 = vld [vmem:[#allocation7 + $0x28] sm:$0xff]
    %v167 = vld [vmem:[#allocation7 + $0x30] sm:$0xff]
    %v168 = vld [vmem:[#allocation7 + $0x38] sm:$0xff]
    %v169 = vld [vmem:[#allocation7 + $0x40] sm:$0xff]
    %v170 = vld [vmem:[#allocation7 + $0x48] sm:$0xff]
    %v171 = vld [vmem:[#allocation7 + $0x50] sm:$0xff]
    %v172 = vld [vmem:[#allocation7 + $0x58] sm:$0xff]
    %v173 = vld [vmem:[#allocation7 + $0x60] sm:$0xff]
    %v174 = vld [vmem:[#allocation7 + $0x68] sm:$0xff]
    %v175 = vld [vmem:[#allocation7 + $0x70] sm:$0xff]
    %v176 = vld [vmem:[#allocation7 + $0x78] sm:$0xff]
    %v177 = vld [vmem:[%s4] sm:$0x1]
    %v179 = vlaneseq
    %v180 = vshrl.u32 %v179, 7
    %v181 = vsub.s32 0, %v180
    %v182 = vrot.slane %v177, %v181
    %184 = vmatprep.subr.mxu0 0.0
    %185 = vmatpush1.msra.mxu0 %v176
    %186 = vmatprep.subr.mxu0 0.0
    %187 = vmatpush1.msra.mxu0 %v175
    %188 = vmatprep.subr.mxu0 0.0
    %189 = vmatpush1.msra.mxu0 %v174
    %190 = vmatprep.subr.mxu0 0.0
    %191 = vmatpush1.msra.mxu0 %v173
    %192 = vmatprep.subr.mxu0 0.0
    %193 = vmatpush1.msra.mxu0 %v172
    %194 = vmatprep.subr.mxu0 0.0
    %195 = vmatpush1.msra.mxu0 %v171
    %196 = vmatprep.subr.mxu0 0.0
    %197 = vmatpush1.msra.mxu0 %v170
    %198 = vmatprep.subr.mxu0 0.0
    %199 = vmatpush1.msra.mxu0 %v169
    %200 = vmatprep.subr.mxu0 0.0
    %201 = vmatpush1.msra.mxu0 %v168
    %202 = vmatprep.subr.mxu0 0.0
    %203 = vmatpush1.msra.mxu0 %v167
    %204 = vmatprep.subr.mxu0 0.0
    %205 = vmatpush1.msra.mxu0 %v166
    %206 = vmatprep.subr.mxu0 0.0
    %207 = vmatpush1.msra.mxu0 %v165
    %208 = vmatprep.subr.mxu0 0.0
    %209 = vmatpush1.msra.mxu0 %v164
    %210 = vmatprep.subr.mxu0 0.0
    %211 = vmatpush1.msra.mxu0 %v163
    %212 = vmatprep.subr.mxu0 0.0
    %213 = vmatpush1.msra.mxu0 %v162
    %214 = vmatprep.subr.mxu0 0.0
    %215 = vmatpush1.msra.mxu0 %v161
    %216 = vmatprep.subr.mxu0 0.0
    %217 = vmatpush2.msra.mxu0 0.0
    %218 = vmatprep.subr.mxu0 0.0
    %219 = vmatpush2.msra.mxu0 0.0
    %220 = vmatprep.subr.mxu0 0.0
    %221 = vmatpush2.msra.mxu0 0.0
    %222 = vmatprep.subr.mxu0 0.0
    %223 = vmatpush2.msra.mxu0 0.0
    %224 = vmatprep.subr.mxu0 0.0
    %225 = vmatpush2.msra.mxu0 0.0
    %226 = vmatprep.subr.mxu0 0.0
    %227 = vmatpush2.msra.mxu0 0.0
    %228 = vmatprep.subr.mxu0 0.0
    %229 = vmatpush2.msra.mxu0 0.0
    %230 = vmatprep.subr.mxu0 0.0
    %231 = vmatpush2.msra.mxu0 0.0
    %232 = vmatprep.subr.mxu0 0.0
    %233 = vmatpush2.msra.mxu0 0.0
    %234 = vmatprep.subr.mxu0 0.0
    %235 = vmatpush2.msra.mxu0 0.0
    %236 = vmatprep.subr.mxu0 0.0
    %237 = vmatpush2.msra.mxu0 0.0
    %238 = vmatprep.subr.mxu0 0.0
    %239 = vmatpush2.msra.mxu0 0.0
    %240 = vmatprep.subr.mxu0 0.0
    %241 = vmatpush2.msra.mxu0 0.0
    %242 = vmatprep.subr.mxu0 0.0
    %243 = vmatpush2.msra.mxu0 0.0
    %244 = vmatprep.subr.mxu0 0.0
    %245 = vmatpush2.msra.mxu0 0.0
    %246 = vmatprep.subr.mxu0 0.0
    %247 = vmatpush2.msra.mxu0 0.0
    %248 = vmatprep.mubr.f32.mxu0 0.0
    %249 = vmatmul.mubr.f32.gmra.mxu0 %v160
    %v250 = vpop.f32.mrf.mxu0
    %v251 = vadd.f32 %v182, %v250
    %v252 = vpop.f32.mrf.mxu0
    %253 = vdwg.mxu0
    %254 = vst [vmem:[#allocation8] sm:$0x3] %v251
    // Predicated region
    $region34: #{tpu_custom_call.1} parent=1 // pred_check
      _
    $region35: #{tpu_custom_call.1} parent=1 // pred_check_branch
      %256 = sbr.rel (0) target = $region37
    $region36: #{tpu_custom_call.1} parent=1 // pred_region
      %s258 = ssub.s32 32, 32
      %259 = vsyncadd [#allocation4], %s258
      %s261 = sshll.u32 [#allocation8], 4
      %s262 = int_to_ptr.vmem [resolvable:$true] %s261
      %264 = dma.vmem_to_hbm [thread:$0]  %s262, 32, %s5, [#allocation4]
    $region37: #{tpu_custom_call.1} parent=1 // pred_fallthru
      _
    // Predicated region
    $region38: #{tpu_custom_call.1} parent=1 // pred_check
      _
    $region39: #{tpu_custom_call.1} parent=1 // pred_check_branch
      %266 = sbr.rel (0) target = $region41
    $region40: #{tpu_custom_call.1} parent=1 // pred_region
      %267 = dma.done [#allocation4], 32
    $region41: #{tpu_custom_call.1} parent=1 // pred_fallthru
      _
    %268 = vsyncpa [#allocation3], 1
    %269 = vsyncpa [#allocation6], 1
    %270 = vsyncpa [#allocation4], 1

</llo_original>
